<compile_context>
chip_gen: v7x
topology: tpu7x:2x2x1
jax: 0.10.0
libtpu: 0.0.40
codegen_flags: <defaults>
</compile_context>

<pallas_src>
import jax
import jax.numpy as jnp
from jax.experimental import pallas as pl
from jax.experimental.pallas import tpu as pltpu

ENTITY_DIM = 31
NUM_NPC_TYPES = 3
FEAT = ENTITY_DIM + NUM_NPC_TYPES - 1  # 33 (id, 3x one-hot npc_type, rest)
ENTITY_ID_COL = 0                      # "id" is the first attribute column
LANE = 128


def _encoder_kernel(ridx_ref, x_ref, w_ref, npc_ref, agent_ref, my_ref, my_scr):
    """One batch row per grid step.

    ridx_ref : (B,)  int32 in SMEM (scalar prefetch) — per-batch my-row index
    x_ref    : (N, 31)  raw agent features for batch b
    w_ref    : (31, Hp+Ip)  [W1_packed_pad | W2_packed_pad]  (npc column zeroed)
    npc_ref  : (3,  Hp+Ip)  per-npc-type one-hot contribution + bias, both heads
    agent_ref: (N, Hp)  agent_fc head output (pre-activation, padded lanes)
    my_ref   : (1, Ip)  ReLU'd my_agent_fc head of row ridx[b]
    my_scr   : (N, Ip)  VMEM scratch holding the my head for all rows
    """
    b = pl.program_id(0)
    x = x_ref[...]                                                # (N, 31) f32

    # Fused agent_fc + my_agent_fc matmul on the MXU (single push).
    full = jnp.dot(x, w_ref[...], preferred_element_type=jnp.float32)  # (N, P)

    # one_hot(npc_type) @ W[1:4] + bias  ==  cheap 3-way VPU select + add.
    npc = x[:, 1:2].astype(jnp.int32)                             # (N, 1)
    full = full + jnp.where(
        npc == 0, npc_ref[0:1, :],
        jnp.where(npc == 1, npc_ref[1:2, :], npc_ref[2:3, :]))

    hp = agent_ref.shape[-1]
    agent_ref[...] = full[:, :hp]       # lane-dense, vreg-aligned store
    my_scr[...] = full[:, hp:]          # my head for all rows stays in VMEM

    # Gather this batch's "my agent" row (scalar index from SMEM) + ReLU.
    r = ridx_ref[b]
    my_ref[...] = jnp.maximum(my_scr[pl.ds(r, 1), :], 0.0)


def init_params(key, input_size, hidden_size):
    """Deterministic Linear params (PyTorch-style uniform fan-in bounds)."""
    k1, k2, k3, k4 = jax.random.split(key, 4)
    bound = 1.0 / jnp.sqrt(jnp.float32(FEAT))
    w1 = jax.random.uniform(k1, (FEAT, hidden_size), jnp.float32, -bound, bound)
    b1 = jax.random.uniform(k2, (1, hidden_size), jnp.float32, -bound, bound)
    w2 = jax.random.uniform(k3, (FEAT, input_size), jnp.float32, -bound, bound)
    b2 = jax.random.uniform(k4, (1, input_size), jnp.float32, -bound, bound)
    return (w1, b1, w2, b2)


def pack_params(params):
    """Repack (w1, b1, w2, b2) into the fused / one-hot-free kernel layout.

    Each head is padded to its own multiple of 128 lanes so the in-kernel
    head slices fall on vreg boundaries. Done once (parameters only).
    """
    w1, b1, w2, b2 = params
    H = w1.shape[1]
    I = w2.shape[1]
    Hp = ((H + LANE - 1) // LANE) * LANE
    Ip = ((I + LANE - 1) // LANE) * LANE

    def restructure(w):  # (33, out) -> (31, out) with the npc column zeroed
        zero = jnp.zeros((1, w.shape[1]), w.dtype)
        return jnp.concatenate([w[0:1], zero, w[4:]], axis=0)

    def pad_to(a, cols):
        return jnp.pad(a, ((0, 0), (0, cols - a.shape[1])))

    w_packed = jnp.concatenate(
        [pad_to(restructure(w1), Hp), pad_to(restructure(w2), Ip)], axis=1)   # (31, Hp+Ip)
    npc_table = jnp.concatenate(
        [pad_to(w1[1:4] + b1, Hp), pad_to(w2[1:4] + b2, Ip)], axis=1)         # (3, Hp+Ip)
    return (w_packed, npc_table, H, I, Hp, Ip)


def player_encoder_forward(agents, my_id, packed):
    """agents: (B, N, 31) float32, my_id: (B,) float32."""
    w_packed, npc_table, H, I, Hp, Ip = packed
    B, N, _ = agents.shape
    P = Hp + Ip

    # Tiny plain-JAX reduce producing the per-batch row index (prefetched to
    # SMEM; the gather itself happens inside the kernel).
    agent_ids = agents[:, :, ENTITY_ID_COL]
    mask = (agent_ids == my_id[:, None]) & (agent_ids != 0)
    row_idx = jnp.where(mask.any(axis=1), jnp.argmax(mask, axis=1), 0)
    row_idx = row_idx.astype(jnp.int32)

    cost = pl.CostEstimate(
        flops=2 * B * N * ENTITY_DIM * P + 3 * B * N * P,
        transcendentals=0,
        bytes_accessed=4 * (B * N * ENTITY_DIM + ENTITY_DIM * P + 3 * P
                            + B * N * Hp + B * Ip + B),
    )

    grid_spec = pltpu.PrefetchScalarGridSpec(
        num_scalar_prefetch=1,
        grid=(B,),
        in_specs=[
            pl.BlockSpec((None, N, ENTITY_DIM), lambda b, ridx: (b, 0, 0)),  # agents
            pl.BlockSpec((ENTITY_DIM, P), lambda b, ridx: (0, 0)),           # fused weights (resident)
            pl.BlockSpec((NUM_NPC_TYPES, P), lambda b, ridx: (0, 0)),        # npc table (resident)
        ],
        out_specs=(
            pl.BlockSpec((None, N, Hp), lambda b, ridx: (b, 0, 0)),          # agent_fc head
            pl.BlockSpec((None, 1, Ip), lambda b, ridx: (b, 0, 0)),          # my row (ReLU'd)
        ),
        scratch_shapes=[pltpu.VMEM((N, Ip), jnp.float32)],
    )

    agent_full, my_full = pl.pallas_call(
        _encoder_kernel,
        out_shape=(jax.ShapeDtypeStruct((B, N, Hp), jnp.float32),
                   jax.ShapeDtypeStruct((B, 1, Ip), jnp.float32)),
        grid_spec=grid_spec,
        compiler_params=pltpu.CompilerParams(
            dimension_semantics=("parallel",),
            vmem_limit_bytes=32 * 1024 * 1024,
        ),
        cost_estimate=cost,
    )(row_idx, agents, w_packed, npc_table)

    agent_emb = agent_full[:, :, :H]     # agent_fc head (no activation)
    my_emb = my_full[:, 0, :I]           # my_agent_fc head (already ReLU'd)
    return agent_emb, my_emb


def _reference_forward(agents, my_id, params):
    """Pure-JAX reference mirroring the PyTorch forward (for verification)."""
    w1, b1, w2, b2 = params
    npc_type = agents[:, :, 1].astype(jnp.int32)
    one_hot_npc = jax.nn.one_hot(npc_type, NUM_NPC_TYPES, dtype=jnp.float32)
    oha = jnp.concatenate([agents[:, :, :1], one_hot_npc, agents[:, :, 2:]], -1)
    agent_ids = oha[:, :, ENTITY_ID_COL]
    mask = (agent_ids == my_id[:, None]) & (agent_ids != 0)
    row_idx = jnp.where(mask.any(axis=1), jnp.argmax(mask, axis=1), 0)
    my_rows = oha[jnp.arange(agents.shape[0]), row_idx]
    agent_emb = oha @ w1 + b1[0]
    my_emb = jnp.maximum(my_rows @ w2 + b2[0], 0.0)
    return agent_emb, my_emb


if __name__ == "__main__":
    B, N = 2, 8               # batch, number of agent rows
    hidden_size = 32
    input_size = 32

    key = jax.random.PRNGKey(0)
    kp, ka, kn = jax.random.split(key, 3)

    params = init_params(kp, input_size, hidden_size)
    packed = pack_params(params)   # one-time parameter repack

    # Deterministic agents tensor: (B, N, 31) float32
    agents = jax.random.uniform(ka, (B, N, ENTITY_DIM), jnp.float32, -1.0, 1.0)
    ids = jnp.broadcast_to(jnp.arange(1, N + 1, dtype=jnp.float32), (B, N))
    agents = agents.at[:, :, 0].set(ids)                      # "id" column
    npc = jax.random.randint(kn, (B, N), 0, NUM_NPC_TYPES)
    agents = agents.at[:, :, 1].set(npc.astype(jnp.float32))  # "npc_type" in {0,1,2}
    my_id = jnp.array([3.0, 5.0], dtype=jnp.float32)          # present in each batch row

    agent_emb, my_emb = player_encoder_forward(agents, my_id, packed)
    jax.block_until_ready((agent_emb, my_emb))

    ref_agent, ref_my = _reference_forward(agents, my_id, params)
    assert agent_emb.shape == (B, N, hidden_size)
    assert my_emb.shape == (B, input_size)
    assert jnp.allclose(agent_emb, ref_agent, atol=1e-4, rtol=1e-4)
    assert jnp.allclose(my_emb, ref_my, atol=1e-4, rtol=1e-4)

    print("KERNEL_OK")
</pallas_src>

<mosaic_0001>
module attributes {stable_mosaic.version = 11 : i64} {
  func.func @_encoder_kernel(%arg0: i32, %arg1: memref<2xi32, #tpu.memory_space<smem>>, %arg2: memref<1x8x31xf32, #tpu.memory_space<vmem>>, %arg3: memref<31x256xf32, #tpu.memory_space<vmem>>, %arg4: memref<3x256xf32, #tpu.memory_space<vmem>>, %arg5: memref<1x8x128xf32, #tpu.memory_space<vmem>>, %arg6: memref<1x1x128xf32, #tpu.memory_space<vmem>>, %arg7: memref<8x128xf32, #tpu.memory_space<vmem>>) attributes {dimension_semantics = [#tpu.dimension_semantics<parallel>], iteration_bounds = array<i64: 2>, scalar_prefetch = 1 : i64, scratch_operands = 1 : i64, tpu.core_type = #tpu.core_type<tc>, window_params = [{transform_indices = @transform_0, window_bounds = array<i64: 1, 8, 31>}, {pipeline_mode = #tpu.pipeline_mode<synchronous>, transform_indices = @transform_1, window_bounds = array<i64: 31, 256>}, {pipeline_mode = #tpu.pipeline_mode<synchronous>, transform_indices = @transform_2, window_bounds = array<i64: 3, 256>}, {transform_indices = @transform_3, window_bounds = array<i64: 1, 8, 128>}, {transform_indices = @transform_4, window_bounds = array<i64: 1, 1, 128>}]} {
    %c0 = arith.constant 0 : index
    %c0_0 = arith.constant 0 : index
    %c0_1 = arith.constant 0 : index
    %0 = vector.load %arg2[%c0, %c0_0, %c0_1] : memref<1x8x31xf32, #tpu.memory_space<vmem>>, vector<1x8x31xf32>
    %1 = vector.shape_cast %0 : vector<1x8x31xf32> to vector<8x31xf32>
    %c0_2 = arith.constant 0 : index
    %c0_3 = arith.constant 0 : index
    %2 = vector.load %arg3[%c0_2, %c0_3] : memref<31x256xf32, #tpu.memory_space<vmem>>, vector<31x256xf32>
    %cst = arith.constant dense<0.000000e+00> : vector<8x256xf32>
    %3 = tpu.matmul %1, %2, %cst {dimension_numbers = #tpu.dot_dimension_numbers<[1], [0], [0], [1], [0, 0, 1, 1], [], []>} : vector<8x31xf32>, vector<31x256xf32>, vector<8x256xf32> -> vector<8x256xf32>
    %4 = vector.extract_strided_slice %1 {offsets = [0, 1], sizes = [8, 1], strides = [1, 1]} : vector<8x31xf32> to vector<8x1xf32>
    %5 = arith.fptosi %4 : vector<8x1xf32> to vector<8x1xi32>
    %c0_i32 = arith.constant 0 : i32
    %6 = vector.broadcast %c0_i32 : i32 to vector<8x1xi32>
    %7 = arith.cmpi eq, %5, %6 : vector<8x1xi32>
    %c0_4 = arith.constant 0 : index
    %c0_5 = arith.constant 0 : index
    %8 = vector.load %arg4[%c0_4, %c0_5] : memref<3x256xf32, #tpu.memory_space<vmem>>, vector<1x256xf32>
    %c1_i32 = arith.constant 1 : i32
    %9 = vector.broadcast %c1_i32 : i32 to vector<8x1xi32>
    %10 = arith.cmpi eq, %5, %9 : vector<8x1xi32>
    %c1 = arith.constant 1 : index
    %c0_6 = arith.constant 0 : index
    %11 = vector.load %arg4[%c1, %c0_6] : memref<3x256xf32, #tpu.memory_space<vmem>>, vector<1x256xf32>
    %c2 = arith.constant 2 : index
    %c0_7 = arith.constant 0 : index
    %12 = vector.load %arg4[%c2, %c0_7] : memref<3x256xf32, #tpu.memory_space<vmem>>, vector<1x256xf32>
    %13 = vector.shape_cast %10 : vector<8x1xi1> to vector<8x1xi1>
    %14 = vector.broadcast %13 : vector<8x1xi1> to vector<8x256xi1>
    %15 = vector.shape_cast %11 : vector<1x256xf32> to vector<1x256xf32>
    %16 = vector.broadcast %15 : vector<1x256xf32> to vector<8x256xf32>
    %17 = vector.shape_cast %12 : vector<1x256xf32> to vector<1x256xf32>
    %18 = vector.broadcast %17 : vector<1x256xf32> to vector<8x256xf32>
    %19 = arith.select %14, %16, %18 : vector<8x256xi1>, vector<8x256xf32>
    %20 = vector.shape_cast %7 : vector<8x1xi1> to vector<8x1xi1>
    %21 = vector.broadcast %20 : vector<8x1xi1> to vector<8x256xi1>
    %22 = vector.shape_cast %8 : vector<1x256xf32> to vector<1x256xf32>
    %23 = vector.broadcast %22 : vector<1x256xf32> to vector<8x256xf32>
    %24 = arith.select %21, %23, %19 : vector<8x256xi1>, vector<8x256xf32>
    %25 = arith.addf %3, %24 : vector<8x256xf32>
    %26 = vector.extract_strided_slice %25 {offsets = [0, 0], sizes = [8, 128], strides = [1, 1]} : vector<8x256xf32> to vector<8x128xf32>
    %c0_8 = arith.constant 0 : index
    %c0_9 = arith.constant 0 : index
    %c0_10 = arith.constant 0 : index
    %27 = vector.load %arg5[%c0_8, %c0_9, %c0_10] : memref<1x8x128xf32, #tpu.memory_space<vmem>>, vector<1x8x128xf32>
    %28 = vector.shape_cast %27 : vector<1x8x128xf32> to vector<8x128xf32>
    %29 = vector.shape_cast %26 : vector<8x128xf32> to vector<1x8x128xf32>
    tpu.vector_store %arg5[%c0_8, %c0_9, %c0_10], %29 {strides = array<i32>} : memref<1x8x128xf32, #tpu.memory_space<vmem>>, vector<1x8x128xf32>,
    %30 = vector.extract_strided_slice %25 {offsets = [0, 128], sizes = [8, 128], strides = [1, 1]} : vector<8x256xf32> to vector<8x128xf32>
    %c0_11 = arith.constant 0 : index
    %c0_12 = arith.constant 0 : index
    %31 = vector.load %arg7[%c0_11, %c0_12] : memref<8x128xf32, #tpu.memory_space<vmem>>, vector<8x128xf32>
    tpu.vector_store %arg7[%c0_11, %c0_12], %30 {strides = array<i32>} : memref<8x128xf32, #tpu.memory_space<vmem>>, vector<8x128xf32>,
    %32 = arith.index_cast %arg0 : i32 to index
    %33 = memref.load %arg1[%32] : memref<2xi32, #tpu.memory_space<smem>>
    %34 = arith.index_cast %33 : i32 to index
    %c0_13 = arith.constant 0 : index
    %35 = vector.load %arg7[%34, %c0_13] : memref<8x128xf32, #tpu.memory_space<vmem>>, vector<1x128xf32>
    %cst_14 = arith.constant 0.000000e+00 : f32
    %36 = vector.broadcast %cst_14 : f32 to vector<1x128xf32>
    %37 = arith.maximumf %35, %36 : vector<1x128xf32>
    %c0_15 = arith.constant 0 : index
    %c0_16 = arith.constant 0 : index
    %c0_17 = arith.constant 0 : index
    %38 = vector.load %arg6[%c0_15, %c0_16, %c0_17] : memref<1x1x128xf32, #tpu.memory_space<vmem>>, vector<1x1x128xf32>
    %39 = vector.shape_cast %38 : vector<1x1x128xf32> to vector<1x128xf32>
    %40 = vector.shape_cast %37 : vector<1x128xf32> to vector<1x1x128xf32>
    tpu.vector_store %arg6[%c0_15, %c0_16, %c0_17], %40 {strides = array<i32>} : memref<1x1x128xf32, #tpu.memory_space<vmem>>, vector<1x1x128xf32>,
    return
  }
  func.func @transform_0(%arg0: i32, %arg1: memref<2xi32, #tpu.memory_space<smem>>) -> (i32, i32, i32) {
    %c0_i32 = arith.constant 0 : i32
    %c0_i32_0 = arith.constant 0 : i32
    %c0_i32_1 = arith.constant 0 : i32
    return %arg0, %c0_i32, %c0_i32_0 : i32, i32, i32
  }
  func.func @transform_1(%arg0: i32, %arg1: memref<2xi32, #tpu.memory_space<smem>>) -> (i32, i32) {
    %c0_i32 = arith.constant 0 : i32
    %c0_i32_0 = arith.constant 0 : i32
    %c0_i32_1 = arith.constant 0 : i32
    return %c0_i32, %c0_i32_0 : i32, i32
  }
  func.func @transform_2(%arg0: i32, %arg1: memref<2xi32, #tpu.memory_space<smem>>) -> (i32, i32) {
    %c0_i32 = arith.constant 0 : i32
    %c0_i32_0 = arith.constant 0 : i32
    %c0_i32_1 = arith.constant 0 : i32
    return %c0_i32, %c0_i32_0 : i32, i32
  }
  func.func @transform_3(%arg0: i32, %arg1: memref<2xi32, #tpu.memory_space<smem>>) -> (i32, i32, i32) {
    %c0_i32 = arith.constant 0 : i32
    %c0_i32_0 = arith.constant 0 : i32
    %c0_i32_1 = arith.constant 0 : i32
    return %arg0, %c0_i32, %c0_i32_0 : i32, i32, i32
  }
  func.func @transform_4(%arg0: i32, %arg1: memref<2xi32, #tpu.memory_space<smem>>) -> (i32, i32, i32) {
    %c0_i32 = arith.constant 0 : i32
    %c0_i32_0 = arith.constant 0 : i32
    %c0_i32_1 = arith.constant 0 : i32
    return %arg0, %c0_i32, %c0_i32_0 : i32, i32, i32
  }
}

</mosaic_0001>

<llo_original>
// kernel: tpu_custom_call.1
$region0: #{tpu_custom_call.1}
  #allocation0 [shape = 'u32[]', space=smem, size = 0x4, offset = 0x4, fixed_abs, tag = 'smem constant byte address 0x4 - core index']
  #allocation1 [shape = 'u32[144,128]{1,0:T(1,128)}', space=vmem, size = 0x12000, scoped, tag = 'internal scratch']
  #allocation2 [shape = 'f32[8,128]{1,0:T(8,128)}', space=vmem, size = 0x1000, scoped, tag = 'scratch operand']
  #allocation3 [shape = 's32[1]{0}', space=sflag, size = 0x4, scoped, tag = 'scoped memory for tpu_custom_call.1']
  #allocation4 [shape = 'u8[512]{0}', space=smem, size = 0x200, scoped, tag = 'prefetched SMEM operand 0']
  %s0 = inlined_call_operand.hbm [shape: s32[2], index: 0, kind: input, shape index: {}]
  %s1 = inlined_call_operand.hbm [shape: f32[2,8,31], index: 1, kind: input, shape index: {}]
  %s2 = inlined_call_operand.hbm [shape: f32[31,256], index: 2, kind: input, shape index: {}]
  %s3 = inlined_call_operand.vmem [shape: f32[3,256], index: 3, kind: input, shape index: {}]
  %s4 = inlined_call_operand.hbm [shape: f32[2,8,128], index: 4, kind: output, shape index: {0}]
  %s5 = inlined_call_operand.hbm [shape: f32[2,1,128], index: 5, kind: output, shape index: {1}]
  %6 = xla_tuple %s4, %s5
  %s7 = sld [smem:[#allocation0]]
  $region61: #{tpu_custom_call.1} parent=0
    _
  %s9 = ssub.s32 1, %s7
  %s10 = scalar_select 0, %s9, %s7
  %12 = dma.hbm_to_smem %s0, 16, [#allocation4], [#allocation3]
  %13 = dma.done [#allocation3], 16
  %14 = sfence
  $region1: #{tpu_custom_call.1} parent=0
    #allocation5 [shape = 'u8[8192]{0}', space=vmem, size = 0x2000, scoped, tag = 'input window, operand 1']
    #allocation6 [shape = 's32[2]{0}', space=sflag, size = 0x8, scoped, tag = 'scoped memory for tpu_custom_call.1']
    #allocation7 [shape = 's32[2]{0}', space=sflag, size = 0x8, scoped, tag = 'scoped memory for tpu_custom_call.1']
    #allocation8 [shape = 'u8[32768]{0}', space=vmem, size = 0x8000, scoped, tag = 'input window, operand 2, single buffered']
    #allocation9 [shape = 's32[1]{0}', space=sflag, size = 0x4, scoped, tag = 'scoped memory for tpu_custom_call.1']
    #allocation10 [shape = 'u8[8192]{0}', space=vmem, size = 0x2000, scoped, tag = 'output window, operand 0']
    #allocation11 [shape = 'u8[1024]{0}', space=vmem, size = 0x400, scoped, tag = 'output window, operand 1']
    #allocation12 [shape = 's32[2]{0}', space=sflag, size = 0x8, scoped, tag = 'scoped memory for tpu_custom_call.1']
    %15 = vsyncpa [#allocation6], 0
    %s16 = scalar_lea.sflag [#allocation6], 1
    %17 = vsyncpa %s16, 0
    %18 = vsyncpa [#allocation9], 0
    %19 = vsyncpa [#allocation7], 0
    %s20 = scalar_lea.sflag [#allocation7], 1
    %21 = vsyncpa %s20, 0
    %22 = vsyncpa [#allocation12], 0
    %s23 = scalar_lea.sflag [#allocation12], 1
    %24 = vsyncpa %s23, 0
    loop: start=0, step=1, limit=4
    $region2: #{tpu_custom_call.1} parent=1 // loop_pre_header
      _
    $region3: #{tpu_custom_call.1} parent=1 // loop_header
      %s26 = sphi 0, %s30
      %p27 = scmp.ge.s32.totalorder %s26, 4
      %s36 = sphi 0, %s38
      %s39 = sphi 0, %s36
      %s40 = sphi 0, %s39
      %s56 = sphi 0, %s40
      %s60 = sphi 0, %s60
      %s62 = sphi 0, %s60
      %s63 = sphi 0, %s62
      %s77 = sphi 0, %s63
      %s81 = sphi 0, %s81
      %s83 = sphi 0, %s81
      %s84 = sphi 0, %s83
      %s98 = sphi 0, %s84
      %s104 = sphi 0, %s106
      %s107 = sphi 0, %s104
      %s108 = sphi 0, %s107
      %s124 = sphi 0, %s108
      %s130 = sphi 0, %s132
      %s133 = sphi 0, %s130
      %s134 = sphi 0, %s133
      %s150 = sphi 0, %s134
    $region4: #{tpu_custom_call.1} parent=1 // loop_header_branch
      %29 = sbr.rel (%p27) target = $region8
    $region5: #{tpu_custom_call.1} parent=1 // loop_body
      %s31 = ssub.s32 %s26, 1
      %s32 = ssub.s32 %s26, 2
      %s33 = sadd.s32 %s26, 1
      %s34 = ssub.s32 %s26, %s33
      %p35 = scmp.eq.s32.totalorder %s34, 0
      %s37 = sadd.s32 %s36, 1
      %s38 = scalar_select %p35, %s36, %s37
      %p41 = pneg %p35
      %p42 = scmp.eq.s32.totalorder %s26, 1
      %p43 = por %p41, %p42
      %p44 = scmp.ne.s32.totalorder %s36, %s39
      %p45 = scmp.eq.s32.totalorder %s26, 0
      %p46 = por %p44, %p45
      %p47 = scmp.ne.s32.totalorder %s36, %s39
      %p48 = scmp.eq.s32.totalorder %s31, 1
      %p49 = por %p47, %p48
      %p50 = scmp.ne.s32.totalorder %s39, %s40
      %p51 = scmp.eq.s32.totalorder %s31, 0
      %p52 = por %p50, %p51
      %p53 = scmp.ne.s32.totalorder %s39, %s40
      %p54 = scmp.eq.s32.totalorder %s32, 1
      %p55 = por %p53, %p54
      %p57 = scmp.ne.s32.totalorder %s40, %s56
      %p58 = scmp.eq.s32.totalorder %s32, 0
      %p59 = por %p57, %p58
      %s61 = sadd.s32 %s60, 1
      %p64 = scmp.eq.s32.totalorder %s26, 1
      %p65 = scmp.ne.s32.totalorder %s60, %s62
      %p66 = scmp.eq.s32.totalorder %s26, 0
      %p67 = por %p65, %p66
      %p68 = scmp.ne.s32.totalorder %s60, %s62
      %p69 = scmp.eq.s32.totalorder %s31, 1
      %p70 = por %p68, %p69
      %p71 = scmp.ne.s32.totalorder %s62, %s63
      %p72 = scmp.eq.s32.totalorder %s31, 0
      %p73 = por %p71, %p72
      %p74 = scmp.ne.s32.totalorder %s62, %s63
      %p75 = scmp.eq.s32.totalorder %s32, 1
      %p76 = por %p74, %p75
      %p78 = scmp.ne.s32.totalorder %s63, %s77
      %p79 = scmp.eq.s32.totalorder %s32, 0
      %p80 = por %p78, %p79
      %s82 = sadd.s32 %s81, 1
      %p85 = scmp.eq.s32.totalorder %s26, 1
      %p86 = scmp.ne.s32.totalorder %s81, %s83
      %p87 = scmp.eq.s32.totalorder %s26, 0
      %p88 = por %p86, %p87
      %p89 = scmp.ne.s32.totalorder %s81, %s83
      %p90 = scmp.eq.s32.totalorder %s31, 1
      %p91 = por %p89, %p90
      %p92 = scmp.ne.s32.totalorder %s83, %s84
      %p93 = scmp.eq.s32.totalorder %s31, 0
      %p94 = por %p92, %p93
      %p95 = scmp.ne.s32.totalorder %s83, %s84
      %p96 = scmp.eq.s32.totalorder %s32, 1
      %p97 = por %p95, %p96
      %p99 = scmp.ne.s32.totalorder %s84, %s98
      %p100 = scmp.eq.s32.totalorder %s32, 0
      %p101 = por %p99, %p100
      %s102 = ssub.s32 %s26, %s33
      %p103 = scmp.eq.s32.totalorder %s102, 0
      %s105 = sadd.s32 %s104, 1
      %s106 = scalar_select %p103, %s104, %s105
      %p109 = pneg %p103
      %p110 = scmp.eq.s32.totalorder %s26, 1
      %p111 = por %p109, %p110
      %p112 = scmp.ne.s32.totalorder %s104, %s107
      %p113 = scmp.eq.s32.totalorder %s26, 0
      %p114 = por %p112, %p113
      %p115 = scmp.ne.s32.totalorder %s104, %s107
      %p116 = scmp.eq.s32.totalorder %s31, 1
      %p117 = por %p115, %p116
      %p118 = scmp.ne.s32.totalorder %s107, %s108
      %p119 = scmp.eq.s32.totalorder %s31, 0
      %p120 = por %p118, %p119
      %p121 = scmp.ne.s32.totalorder %s107, %s108
      %p122 = scmp.eq.s32.totalorder %s32, 1
      %p123 = por %p121, %p122
      %p125 = scmp.ne.s32.totalorder %s108, %s124
      %p126 = scmp.eq.s32.totalorder %s32, 0
      %p127 = por %p125, %p126
      %s128 = ssub.s32 %s26, %s33
      %p129 = scmp.eq.s32.totalorder %s128, 0
      %s131 = sadd.s32 %s130, 1
      %s132 = scalar_select %p129, %s130, %s131
      %p135 = pneg %p129
      %p136 = scmp.eq.s32.totalorder %s26, 1
      %p137 = por %p135, %p136
      %p138 = scmp.ne.s32.totalorder %s130, %s133
      %p139 = scmp.eq.s32.totalorder %s26, 0
      %p140 = por %p138, %p139
      %p141 = scmp.ne.s32.totalorder %s130, %s133
      %p142 = scmp.eq.s32.totalorder %s31, 1
      %p143 = por %p141, %p142
      %p144 = scmp.ne.s32.totalorder %s133, %s134
      %p145 = scmp.eq.s32.totalorder %s31, 0
      %p146 = por %p144, %p145
      %p147 = scmp.ne.s32.totalorder %s133, %s134
      %p148 = scmp.eq.s32.totalorder %s32, 1
      %p149 = por %p147, %p148
      %p151 = scmp.ne.s32.totalorder %s134, %s150
      %p152 = scmp.eq.s32.totalorder %s32, 0
      %p153 = por %p151, %p152
      %p154 = scmp.le.s32.totalorder 1, %s26
      %p155 = scmp.lt.s32.totalorder %s26, 3
      %p156 = pnand %p154, %p155
      %p157 = pneg %p156
      // Predicated region
      $region9: #{tpu_custom_call.1} parent=5 // pred_check
        _
      $region10: #{tpu_custom_call.1} parent=5 // pred_check_branch
        %159 = sbr.rel (%p156) target = $region12
      $region11: #{tpu_custom_call.1} parent=5 // pred_region
        %s160 = ssub.s32 %s26, 1
        // Predicated region
        $region13: #{tpu_custom_call.1} parent=11 // pred_check
          %p161 = pneg %p73
        $region14: #{tpu_custom_call.1} parent=11 // pred_check_branch
          %163 = sbr.rel (%p161) target = $region16
        $region15: #{tpu_custom_call.1} parent=11 // pred_region
          %s165 = ssub.s32 1024, 1024
          %166 = vsyncadd [#allocation9], %s165
          %s167 = sshll.u32 [#allocation8], 4
          %s168 = int_to_ptr.vmem [resolvable:$true] %s167
          %173 = dma.hbm_to_vmem [thread:$0]  %s2, 1024, %s168, [#allocation9], 256, 256, 16
        $region16: #{tpu_custom_call.1} parent=11 // pred_fallthru
          _
        // Predicated region
        $region17: #{tpu_custom_call.1} parent=11 // pred_check
          %p174 = pneg %p94
        $region18: #{tpu_custom_call.1} parent=11 // pred_check_branch
          %176 = sbr.rel (%p174) target = $region20
        $region19: #{tpu_custom_call.1} parent=11 // pred_region
          _
        $region20: #{tpu_custom_call.1} parent=11 // pred_fallthru
          _
      $region12: #{tpu_custom_call.1} parent=5 // pred_fallthru
        _
      %p177 = scmp.lt.s32.totalorder %s26, 2
      // Predicated region
      $region21: #{tpu_custom_call.1} parent=5 // pred_check
        %p178 = pneg %p177
      $region22: #{tpu_custom_call.1} parent=5 // pred_check_branch
        %180 = sbr.rel (%p178) target = $region24
      $region23: #{tpu_custom_call.1} parent=5 // pred_region
        // Predicated region
        $region25: #{tpu_custom_call.1} parent=23 // pred_check
          %p181 = pneg %p46
        $region26: #{tpu_custom_call.1} parent=23 // pred_check_branch
          %183 = sbr.rel (%p181) target = $region28
        $region27: #{tpu_custom_call.1} parent=23 // pred_region
          %s184 = sand.u32 %s36, 1
          %s185 = scalar_lea.sflag [#allocation6], %s184
          %s186 = sand.u32 %s36, 1
          %s187 = smul.addr %s186, 8
          %s188 = scalar_lea.vmem [#allocation5], %s187
          %s190 = ssub.s32 128, 128
          %191 = vsyncadd %s185, %s190
          %s192 = smul.addr %s26, 128
          %s193 = scalar_lea.hbm %s1, %s192
          %s195 = sshll.u32 %s188, 4
          %s196 = int_to_ptr.vmem [resolvable:$true] %s195
          %198 = dma.hbm_to_vmem [thread:$0]  %s193, 128, %s196, %s185
        $region28: #{tpu_custom_call.1} parent=23 // pred_fallthru
          _
      $region24: #{tpu_custom_call.1} parent=5 // pred_fallthru
        _
      %p199 = scmp.le.s32.totalorder 1, %s26
      %p200 = scmp.lt.s32.totalorder %s26, 3
      %p201 = pnand %p199, %p200
      %p202 = pneg %p201
      // Predicated region
      $region29: #{tpu_custom_call.1} parent=5 // pred_check
        _
      $region30: #{tpu_custom_call.1} parent=5 // pred_check_branch
        %204 = sbr.rel (%p201) target = $region32
      $region31: #{tpu_custom_call.1} parent=5 // pred_region
        %s205 = ssub.s32 %s26, 1
        %s206 = sand.u32 %s39, 1
        %s207 = scalar_lea.sflag [#allocation6], %s206
        %s208 = sand.u32 %s39, 1
        %s209 = smul.addr %s208, 8
        %s210 = scalar_lea.vmem [#allocation5], %s209
        // Predicated region
        $region33: #{tpu_custom_call.1} parent=31 // pred_check
          %p211 = pneg %p52
        $region34: #{tpu_custom_call.1} parent=31 // pred_check_branch
          %213 = sbr.rel (%p211) target = $region36
        $region35: #{tpu_custom_call.1} parent=31 // pred_region
          %214 = dma.done %s207, 128
        $region36: #{tpu_custom_call.1} parent=31 // pred_fallthru
          _
        // Predicated region
        $region37: #{tpu_custom_call.1} parent=31 // pred_check
          %p215 = pneg %p73
        $region38: #{tpu_custom_call.1} parent=31 // pred_check_branch
          %217 = sbr.rel (%p215) target = $region40
        $region39: #{tpu_custom_call.1} parent=31 // pred_region
          %218 = dma.done [#allocation9], 1024
        $region40: #{tpu_custom_call.1} parent=31 // pred_fallthru
          _
        %s219 = sand.u32 %s39, 1
        %s220 = scalar_lea.sflag [#allocation6], %s219
        %s221 = sand.u32 %s39, 1
        %s222 = smul.addr %s221, 8
        %s223 = scalar_lea.vmem [#allocation5], %s222
        %p224 = pneg %p52
        %p225 = pneg %p49
        %p226 = pneg %p73
        %p227 = pneg %p70
        %p228 = pneg %p94
        %p229 = pneg %p91
        %p230 = pneg %p120
        %p231 = pneg %p117
        %s232 = sand.u32 %s107, 1
        %s233 = scalar_lea.sflag [#allocation7], %s232
        %s234 = sand.u32 %s107, 1
        %s235 = smul.addr %s234, 8
        %s236 = scalar_lea.vmem [#allocation10], %s235
        %p237 = pneg %p146
        %p238 = pneg %p143
        %s239 = sand.u32 %s133, 1
        %s240 = scalar_lea.sflag [#allocation12], %s239
        %s241 = sand.u32 %s133, 1
        %s242 = scalar_lea.vmem [#allocation11], %s241
        %v243 = vld [vmem:[%s210] sm:$0xff]
        %v244 = vld [vmem:[#allocation8] sm:$0xff]
        %v245 = vld [vmem:[#allocation8 + $0x8] sm:$0xff]
        %v246 = vld [vmem:[#allocation8 + $0x10] sm:$0xff]
        %v247 = vld [vmem:[#allocation8 + $0x18] sm:$0xff]
        %v248 = vld [vmem:[#allocation8 + $0x20] sm:$0xff]
        %v249 = vld [vmem:[#allocation8 + $0x28] sm:$0xff]
        %v250 = vld [vmem:[#allocation8 + $0x30] sm:$0x7f]
        %v251 = vld [vmem:[#allocation8 + $0x38] sm:$0x7f]
        %v252 = vcvt.f32.s32.to.zero.pseudo %v243
        %vm253 = vcmp.eq.s32.totalorder %v252, 0
        %v254 = vld [vmem:[%s3] ss:$4 sm:$0x3]
        %vm255 = vcmp.eq.s32.totalorder %v252, 1
        %s256 = scalar_lea.vmem %s3, 1
        %v257 = vld [vmem:[%s256] ss:$4 sm:$0x3]
        %s258 = scalar_lea.vmem %s3, 2
        %v259 = vld [vmem:[%s258] ss:$4 sm:$0x3]
        %v260 = vsel %vm255, 1, 0
        %261 = vset.pattern.permute.xlu0 1
        %262 = vperm.xlu0 %261, %v260
        %v263 = vpop.permute.xlu0 %262
        %vm264 = vcmp.eq.s32.totalorder %v263, 1
        %v266 = vlaneseq
        %v267 = vshrl.u32 %v266, 7
        %v268 = vsub.s32 0, %v267
        %v269 = vrot.slane %v257, %v268
        %v270 = vlaneseq
        %v271 = vshrl.u32 %v270, 7
        %v272 = vsub.s32 1, %v271
        %v273 = vrot.slane %v257, %v272
        %v277 = vlaneseq
        %v278 = vshrl.u32 %v277, 7
        %v279 = vsub.s32 0, %v278
        %v280 = vrot.slane %v259, %v279
        %v281 = vlaneseq
        %v282 = vshrl.u32 %v281, 7
        %v283 = vsub.s32 1, %v282
        %v284 = vrot.slane %v259, %v283
        %v287 = vsel %vm264, %v269, %v280
        %v288 = vsel %vm264, %v273, %v284
        %v289 = vsel %vm253, 1, 0
        %290 = vset.pattern.permute.xlu0 1
        %291 = vperm.xlu0 %290, %v289
        %v292 = vpop.permute.xlu0 %291
        %vm293 = vcmp.eq.s32.totalorder %v292, 1
        %v295 = vlaneseq
        %v296 = vshrl.u32 %v295, 7
        %v297 = vsub.s32 0, %v296
        %v298 = vrot.slane %v254, %v297
        %v299 = vlaneseq
        %v300 = vshrl.u32 %v299, 7
        %v301 = vsub.s32 1, %v300
        %v302 = vrot.slane %v254, %v301
        %v305 = vsel %vm293, %v298, %v287
        %v306 = vsel %vm293, %v302, %v288
        %vm307 = vcmask 252928
        %v309 = vsel %vm307, %v243, 0
        %vm311 = vcmask 1046528
        %v313 = vsel %vm311, %v250, 0
        %v316 = vsel %vm311, %v251, 0
        %318 = vmatprep.subr.mxu0 %v245
        %319 = vmatpush1.msra.mxu0 %v244
        %320 = vmatprep.subr.mxu0 %v247
        %321 = vmatpush1.msra.mxu0 %v246
        %322 = vmatprep.subr.mxu0 %v249
        %323 = vmatpush1.msra.mxu0 %v248
        %324 = vmatprep.subr.mxu0 %v316
        %325 = vmatpush1.msra.mxu0 %v313
        %326 = vmatprep.subr.mxu0 0.0
        %327 = vmatpush1.msra.mxu0 0.0
        %328 = vmatprep.subr.mxu0 0.0
        %329 = vmatpush1.msra.mxu0 0.0
        %330 = vmatprep.subr.mxu0 0.0
        %331 = vmatpush1.msra.mxu0 0.0
        %332 = vmatprep.subr.mxu0 0.0
        %333 = vmatpush1.msra.mxu0 0.0
        %334 = vmatprep.subr.mxu0 0.0
        %335 = vmatpush1.msra.mxu0 0.0
        %336 = vmatprep.subr.mxu0 0.0
        %337 = vmatpush1.msra.mxu0 0.0
        %338 = vmatprep.subr.mxu0 0.0
        %339 = vmatpush1.msra.mxu0 0.0
        %340 = vmatprep.subr.mxu0 0.0
        %341 = vmatpush1.msra.mxu0 0.0
        %342 = vmatprep.subr.mxu0 0.0
        %343 = vmatpush1.msra.mxu0 0.0
        %344 = vmatprep.subr.mxu0 0.0
        %345 = vmatpush1.msra.mxu0 0.0
        %346 = vmatprep.subr.mxu0 0.0
        %347 = vmatpush1.msra.mxu0 0.0
        %348 = vmatprep.subr.mxu0 0.0
        %349 = vmatpush1.msra.mxu0 0.0
        %350 = vmatprep.subr.mxu0 0.0
        %351 = vmatpush1.msra.mxu0 0.0
        %352 = vmatprep.subr.mxu0 0.0
        %353 = vmatpush1.msra.mxu0 0.0
        %354 = vmatprep.subr.mxu0 0.0
        %355 = vmatpush1.msra.mxu0 0.0
        %356 = vmatprep.subr.mxu0 0.0
        %357 = vmatpush1.msra.mxu0 0.0
        %358 = vmatprep.subr.mxu0 0.0
        %359 = vmatpush1.msra.mxu0 0.0
        %360 = vmatprep.subr.mxu0 0.0
        %361 = vmatpush1.msra.mxu0 0.0
        %362 = vmatprep.subr.mxu0 0.0
        %363 = vmatpush1.msra.mxu0 0.0
        %364 = vmatprep.subr.mxu0 0.0
        %365 = vmatpush1.msra.mxu0 0.0
        %366 = vmatprep.subr.mxu0 0.0
        %367 = vmatpush1.msra.mxu0 0.0
        %368 = vmatprep.subr.mxu0 0.0
        %369 = vmatpush1.msra.mxu0 0.0
        %370 = vmatprep.subr.mxu0 0.0
        %371 = vmatpush1.msra.mxu0 0.0
        %372 = vmatprep.subr.mxu0 0.0
        %373 = vmatpush1.msra.mxu0 0.0
        %374 = vmatprep.subr.mxu0 0.0
        %375 = vmatpush1.msra.mxu0 0.0
        %376 = vmatprep.subr.mxu0 0.0
        %377 = vmatpush1.msra.mxu0 0.0
        %378 = vmatprep.subr.mxu0 0.0
        %379 = vmatpush1.msra.mxu0 0.0
        %380 = vmatprep.subr.mxu0 0.0
        %381 = vmatpush1.msra.mxu0 0.0
        %382 = vmatprep.mubr.f32.mxu0 0.0
        %383 = vmatmul.mubr.f32.gmra.mrb[0].mxu0 %v309
        %v384 = vpop.f32.mrb[0].mxu0
        %v385 = vadd.f32 %v305, %v384
        %v386 = vpop.f32.mrb[0].mxu0
        %v387 = vadd.f32 %v306, %v386
        %388 = vdwg.mxu0
        %389 = vst [vmem:[%s236] sm:$0xff] %v385
        %390 = vst [vmem:[#allocation2] sm:$0xff] %v387
        %s391 = sld [smem:[#allocation4 + %s31]]
        %s392 = scalar_lea.vmem [#allocation2], %s391
        %v393 = vld [vmem:[%s392] sm:$0x1]
        %v394 = vmax.f32 %v393, 0.0
        %395 = vst [vmem:[%s242] sm:$0x1] %v394
        %s396 = sand.u32 %s107, 1
        %s397 = scalar_lea.sflag [#allocation7], %s396
        %s398 = sand.u32 %s107, 1
        %s399 = smul.addr %s398, 8
        %s400 = scalar_lea.vmem [#allocation10], %s399
        %s401 = sand.u32 %s133, 1
        %s402 = scalar_lea.sflag [#allocation12], %s401
        %s403 = sand.u32 %s133, 1
        %s404 = scalar_lea.vmem [#allocation11], %s403
        // Predicated region
        $region41: #{tpu_custom_call.1} parent=31 // pred_check
          %p405 = pneg %p117
        $region42: #{tpu_custom_call.1} parent=31 // pred_check_branch
          %407 = sbr.rel (%p405) target = $region44
        $region43: #{tpu_custom_call.1} parent=31 // pred_region
          %s409 = ssub.s32 128, 128
          %410 = vsyncadd %s397, %s409
          %s411 = smul.addr %s31, 128
          %s412 = scalar_lea.hbm %s4, %s411
          %s414 = sshll.u32 %s400, 4
          %s415 = int_to_ptr.vmem [resolvable:$true] %s414
          %417 = dma.vmem_to_hbm [thread:$0]  %s415, 128, %s412, %s397
        $region44: #{tpu_custom_call.1} parent=31 // pred_fallthru
          _
        // Predicated region
        $region45: #{tpu_custom_call.1} parent=31 // pred_check
          %p418 = pneg %p143
        $region46: #{tpu_custom_call.1} parent=31 // pred_check_branch
          %420 = sbr.rel (%p418) target = $region48
        $region47: #{tpu_custom_call.1} parent=31 // pred_region
          %s422 = ssub.s32 16, 16
          %423 = vsyncadd %s402, %s422
          %s424 = smul.addr %s31, 16
          %s425 = scalar_lea.hbm %s5, %s424
          %s427 = sshll.u32 %s404, 4
          %s428 = int_to_ptr.vmem [resolvable:$true] %s427
          %430 = dma.vmem_to_hbm [thread:$0]  %s428, 16, %s425, %s402
        $region48: #{tpu_custom_call.1} parent=31 // pred_fallthru
          _
      $region32: #{tpu_custom_call.1} parent=5 // pred_fallthru
        _
      %p431 = scmp.le.s32.totalorder 2, %s26
      // Predicated region
      $region49: #{tpu_custom_call.1} parent=5 // pred_check
        %p432 = pneg %p431
      $region50: #{tpu_custom_call.1} parent=5 // pred_check_branch
        %434 = sbr.rel (%p432) target = $region52
      $region51: #{tpu_custom_call.1} parent=5 // pred_region
        %s435 = ssub.s32 %s26, 2
        // Predicated region
        $region53: #{tpu_custom_call.1} parent=51 // pred_check
          %p436 = pneg %p123
        $region54: #{tpu_custom_call.1} parent=51 // pred_check_branch
          %438 = sbr.rel (%p436) target = $region56
        $region55: #{tpu_custom_call.1} parent=51 // pred_region
          %s439 = sand.u32 %s108, 1
          %s440 = scalar_lea.sflag [#allocation7], %s439
          %s441 = sand.u32 %s108, 1
          %s442 = smul.addr %s441, 8
          %s443 = scalar_lea.vmem [#allocation10], %s442
          %444 = dma.done %s440, 128
        $region56: #{tpu_custom_call.1} parent=51 // pred_fallthru
          _
        // Predicated region
        $region57: #{tpu_custom_call.1} parent=51 // pred_check
          %p445 = pneg %p149
        $region58: #{tpu_custom_call.1} parent=51 // pred_check_branch
          %447 = sbr.rel (%p445) target = $region60
        $region59: #{tpu_custom_call.1} parent=51 // pred_region
          %s448 = sand.u32 %s134, 1
          %s449 = scalar_lea.sflag [#allocation12], %s448
          %s450 = sand.u32 %s134, 1
          %s451 = scalar_lea.vmem [#allocation11], %s450
          %452 = dma.done %s449, 16
        $region60: #{tpu_custom_call.1} parent=51 // pred_fallthru
          _
      $region52: #{tpu_custom_call.1} parent=5 // pred_fallthru
        _
    $region6: #{tpu_custom_call.1} parent=1 // loop_footer
      %s30 = sadd.s32 1, %s26
    $region7: #{tpu_custom_call.1} parent=1 // loop_footer_branch
      %25 = sbr.rel target = $region3
    $region8: #{tpu_custom_call.1} parent=1 // loop_exit
      _
    %453 = vsyncpa [#allocation6], 1
    %s454 = scalar_lea.sflag [#allocation6], 1
    %455 = vsyncpa %s454, 1
    %456 = vsyncpa [#allocation9], 1
    %457 = vsyncpa [#allocation7], 1
    %s458 = scalar_lea.sflag [#allocation7], 1
    %459 = vsyncpa %s458, 1
    %460 = vsyncpa [#allocation12], 1
    %s461 = scalar_lea.sflag [#allocation12], 1
    %462 = vsyncpa %s461, 1

</llo_original>
